<compile_context>
chip_gen: v7x
topology: tpu7x:2x2x1
jax: 0.10.0
libtpu: 0.0.40
codegen_flags: <defaults>
</compile_context>

<pallas_src>
import jax
import jax.numpy as jnp
from jax.experimental import pallas as pl
from jax.experimental.pallas import tpu as pltpu


# ---------------------------------------------------------------------------
# Small helpers
# ---------------------------------------------------------------------------

def _round_up(x, m):
    return ((x + m - 1) // m) * m


def _tpu_vmem_capacity():
    try:
        return int(pltpu.get_tpu_info().vmem_capacity_bytes)
    except Exception:
        return 64 << 20  # conservative (v7x per-TC VMEM)


def _choose_row_tile(nc, per_row_bytes, usable_bytes, multiple, total_stream_bytes):
    """Largest row tile whose padded working set fits `usable_bytes`.

    Keeps >= ~8 grid steps when the streamed input is big enough that
    software pipelining / dual-TC sharding matters; tiny inputs get one step.
    """
    tile = max(1, usable_bytes // max(1, per_row_bytes))
    if total_stream_bytes >= (4 << 20):
        tile = min(tile, max(1, -(-nc // 8)))  # cdiv(nc, 8) -> >= ~8 steps
    if tile >= nc:
        return nc
    tile = max(multiple, (tile // multiple) * multiple)
    return min(tile, nc)


# ---------------------------------------------------------------------------
# Dense-layout kernels (W on lanes; used when W % 128 == 0 or H*W is large)
# ---------------------------------------------------------------------------

def _mean_kernel_dense(x_ref, o_ref):
    # x_ref: (TR, H, W) -> o_ref: (TR, 1, H)
    x = x_ref[...].astype(jnp.float32)
    o_ref[:, 0, :] = jnp.mean(x, axis=-1).astype(o_ref.dtype)


def _meanstd_kernel_dense(x_ref, o_ref):
    # x_ref: (TR, H, W) -> o_ref: (TR, 2, H)  ([:,0,:]=mean, [:,1,:]=std)
    x = x_ref[...].astype(jnp.float32)
    w = x.shape[-1]
    mean = jnp.mean(x, axis=-1, keepdims=True)          # pass 1
    diff = x - mean                                     # pass 2 (VMEM-resident, free)
    var = jnp.sum(diff * diff, axis=-1) / (w - 1)       # unbiased (torch default)
    o_ref[:, 0, :] = mean[..., 0].astype(o_ref.dtype)
    o_ref[:, 1, :] = jnp.sqrt(var).astype(o_ref.dtype)


# ---------------------------------------------------------------------------
# Lane-dense kernels (input viewed as (rows, H*W); grouped W-sum on the MXU)
# ---------------------------------------------------------------------------

def _group_selectors(h, w, dtype):
    """0/1 matrices mapping flat H*W lanes to their H group (and back)."""
    hw = h * w
    k = jax.lax.broadcasted_iota(jnp.int32, (hw, h), 0)
    g = jax.lax.broadcasted_iota(jnp.int32, (hw, h), 1)
    sel = ((k >= g * w) & (k < (g + 1) * w)).astype(dtype)        # (HW, H)
    gt = jax.lax.broadcasted_iota(jnp.int32, (h, hw), 0)
    kt = jax.lax.broadcasted_iota(jnp.int32, (h, hw), 1)
    sel_t = ((kt >= gt * w) & (kt < (gt + 1) * w)).astype(dtype)  # (H, HW)
    return sel, sel_t


def _make_lane_dense_mean(h, w):
    inv_w = 1.0 / w

    def kernel(x_ref, o_ref):
        # x_ref: (TR, H*W) lane-dense -> o_ref: (TR, 1, H)
        x = x_ref[...].astype(jnp.float32)
        sel, _ = _group_selectors(h, w, jnp.float32)
        s1 = jnp.dot(x, sel, precision=jax.lax.Precision.HIGHEST,
                     preferred_element_type=jnp.float32)
        o_ref[:, 0, :] = (s1 * inv_w).astype(o_ref.dtype)

    return kernel


def _make_lane_dense_meanstd(h, w):
    inv_w = 1.0 / w

    def kernel(x_ref, o_ref):
        # x_ref: (TR, H*W) lane-dense -> o_ref: (TR, 2, H)
        x = x_ref[...].astype(jnp.float32)
        sel, sel_t = _group_selectors(h, w, jnp.float32)
        s1 = jnp.dot(x, sel, precision=jax.lax.Precision.HIGHEST,
                     preferred_element_type=jnp.float32)
        mean = s1 * inv_w                                          # (TR, H)
        # Exact scatter of each group mean back over its W lanes (0/1 matrix).
        mean_full = jnp.dot(mean, sel_t, precision=jax.lax.Precision.HIGHEST,
                            preferred_element_type=jnp.float32)    # (TR, H*W)
        diff = x - mean_full                                       # two-pass variance
        s2 = jnp.dot(diff * diff, sel, precision=jax.lax.Precision.HIGHEST,
                     preferred_element_type=jnp.float32)
        var = s2 / (w - 1)
        o_ref[:, 0, :] = mean.astype(o_ref.dtype)
        o_ref[:, 1, :] = jnp.sqrt(var).astype(o_ref.dtype)

    return kernel


# ---------------------------------------------------------------------------
# Public wrapper
# ---------------------------------------------------------------------------

def stats_pooling(x, pooling="mean"):
    if pooling not in ("mean", "mean+std"):
        raise NotImplementedError
    n, c, h, w = x.shape
    nc = n * c
    itemsize = jnp.dtype(x.dtype).itemsize
    sub = max(8, 32 // itemsize)  # sublane multiple: f32->8, bf16->16, int8->32

    cap = _tpu_vmem_capacity()
    # Working-set budget: ~40 MiB on 128-MiB chips (v5e/v6e), <= cap/2 - 4 MiB
    # headroom on v7x (64 MiB), never below 8 MiB.
    usable = max(8 << 20, min(40 << 20, cap // 2 - (4 << 20)))

    # Lane-dense path: W would only part-fill the 128-lane vregs, and the
    # selector matmul (<= ~2*32 f32 MXU flops per loaded element) stays far
    # below the HBM roofline on all generations.
    lane_dense = (w % 128 != 0) and (h <= 32) and (h * w <= 4096)

    if lane_dense:
        xr = x.reshape(nc, h * w)                      # contiguous -> free reshape
        in_row = _round_up(h * w, 128) * itemsize      # padded input bytes / row
        f32_row = _round_up(h * w, 128) * 4            # padded f32 temp bytes / row
        multiple = 8                                   # (tile, H*W) block: sublane rule
        in_specs = [pl.BlockSpec((None, h * w), None)]  # placeholder, set below
    else:
        xr = x.reshape(nc, h, w)
        in_row = _round_up(h, sub) * _round_up(w, 128) * itemsize
        f32_row = _round_up(h, 8) * _round_up(w, 128) * 4
        multiple = 1                                   # (H, W) are full dims

    n_tmp = 1 if pooling == "mean" else 2              # concurrent f32 temporaries
    per_row = 2 * in_row + n_tmp * f32_row             # 2x = double-buffered input
    tile = _choose_row_tile(nc, per_row, usable, multiple, nc * in_row)
    grid = (pl.cdiv(nc, tile),)

    # TODO(synk): if a single (H, W) row slab exceeds the VMEM budget (H*W in
    # the multi-million-element range), add an "arbitrary" grid axis over W
    # with a VMEM accumulator instead of relying on tile == 1 fitting.
    vmem_limit = int(max(16 << 20, min(cap // 2, tile * per_row + (8 << 20))))

    cparams = pltpu.CompilerParams(
        dimension_semantics=("parallel",),
        vmem_limit_bytes=vmem_limit,
    )

    if lane_dense:
        in_specs = [pl.BlockSpec((tile, h * w), lambda i: (i, 0))]
    else:
        in_specs = [pl.BlockSpec((tile, h, w), lambda i: (i, 0, 0))]

    if pooling == "mean":
        kernel = _make_lane_dense_mean(h, w) if lane_dense else _mean_kernel_dense
        out = pl.pallas_call(
            kernel,
            out_shape=jax.ShapeDtypeStruct((nc, 1, h), x.dtype),
            grid=grid,
            in_specs=in_specs,
            out_specs=pl.BlockSpec((tile, 1, h), lambda i: (i, 0, 0)),
            compiler_params=cparams,
        )(xr)
        # AdaptiveAvgPool2d((None, 1)) output shape; reshape is free (row-major).
        return out.reshape(n, c, h, 1)

    kernel = _make_lane_dense_meanstd(h, w) if lane_dense else _meanstd_kernel_dense
    out = pl.pallas_call(
        kernel,
        out_shape=jax.ShapeDtypeStruct((nc, 2, h), x.dtype),
        grid=grid,
        in_specs=in_specs,
        out_specs=pl.BlockSpec((tile, 2, h), lambda i: (i, 0, 0)),
        compiler_params=cparams,
    )(xr)
    # (nc, 2, h) -> (n, c, 2h): row-major order == cat([mean, std], -1); free.
    return out.reshape(n, c, 2 * h)


# ---------------------------------------------------------------------------
# Self-test
# ---------------------------------------------------------------------------

if __name__ == "__main__":
    k0, k1 = jax.random.split(jax.random.PRNGKey(0))

    # Small-W case (exercises the lane-dense / MXU grouped-reduction path).
    N, C, H, W = 2, 4, 16, 16
    x = jax.random.normal(k0, (N, C, H, W), dtype=jnp.float32)

    out_mean = jax.block_until_ready(stats_pooling(x, pooling="mean"))
    ref_mean = jnp.mean(x, axis=3, keepdims=True)
    assert out_mean.shape == (N, C, H, 1)
    assert jnp.allclose(out_mean, ref_mean, atol=1e-4, rtol=1e-4)

    out_ms = jax.block_until_ready(stats_pooling(x, pooling="mean+std"))
    ref_ms = jnp.concatenate(
        [jnp.mean(x, axis=3), jnp.sqrt(jnp.var(x, axis=3, ddof=1))], axis=-1)
    assert out_ms.shape == (N, C, 2 * H)
    assert jnp.allclose(out_ms, ref_ms, atol=1e-4, rtol=1e-4)

    # Lane-aligned case (exercises the dense W-on-lanes path).
    y = jax.random.normal(k1, (2, 2, 8, 128), dtype=jnp.float32)

    out_mean2 = jax.block_until_ready(stats_pooling(y, pooling="mean"))
    assert jnp.allclose(out_mean2, jnp.mean(y, axis=3, keepdims=True),
                        atol=1e-4, rtol=1e-4)

    out_ms2 = jax.block_until_ready(stats_pooling(y, pooling="mean+std"))
    ref_ms2 = jnp.concatenate(
        [jnp.mean(y, axis=3), jnp.sqrt(jnp.var(y, axis=3, ddof=1))], axis=-1)
    assert out_ms2.shape == (2, 2, 16)
    assert jnp.allclose(out_ms2, ref_ms2, atol=1e-4, rtol=1e-4)

    print("KERNEL_OK")
</pallas_src>

<mosaic_0001>
module attributes {stable_mosaic.version = 11 : i64} {
  func.func @kernel(%arg0: i32, %arg1: memref<8x256xf32, #tpu.memory_space<vmem>>, %arg2: memref<8x1x16xf32, #tpu.memory_space<vmem>>) attributes {dimension_semantics = [#tpu.dimension_semantics<parallel>], iteration_bounds = array<i64: 1>, scalar_prefetch = 0 : i64, scratch_operands = 0 : i64, tpu.core_type = #tpu.core_type<tc>, window_params = [{transform_indices = @transform_0, window_bounds = array<i64: 8, 256>}, {transform_indices = @transform_1, window_bounds = array<i64: 8, 1, 16>}]} {
    %c0 = arith.constant 0 : index
    %c0_0 = arith.constant 0 : index
    %0 = vector.load %arg1[%c0, %c0_0] : memref<8x256xf32, #tpu.memory_space<vmem>>, vector<8x256xf32>
    %1 = tpu.iota {dimensions = array<i32: 0>} : vector<256x16xi32>
    %2 = tpu.iota {dimensions = array<i32: 1>} : vector<256x16xi32>
    %c16_i32 = arith.constant 16 : i32
    %3 = vector.broadcast %c16_i32 : i32 to vector<256x16xi32>
    %4 = arith.muli %2, %3 : vector<256x16xi32>
    %5 = arith.cmpi sge, %1, %4 : vector<256x16xi32>
    %c1_i32 = arith.constant 1 : i32
    %6 = vector.broadcast %c1_i32 : i32 to vector<256x16xi32>
    %7 = arith.addi %2, %6 : vector<256x16xi32>
    %c16_i32_1 = arith.constant 16 : i32
    %8 = vector.broadcast %c16_i32_1 : i32 to vector<256x16xi32>
    %9 = arith.muli %7, %8 : vector<256x16xi32>
    %10 = arith.cmpi slt, %1, %9 : vector<256x16xi32>
    %11 = arith.andi %5, %10 : vector<256x16xi1>
    %12 = arith.extui %11 : vector<256x16xi1> to vector<256x16xi32>
    %13 = arith.sitofp %12 : vector<256x16xi32> to vector<256x16xf32>
    %cst = arith.constant dense<0.000000e+00> : vector<8x16xf32>
    %14 = tpu.matmul %0, %13, %cst {dimension_numbers = #tpu.dot_dimension_numbers<[1], [0], [0], [1], [0, 0, 1, 1], [], []>, precision = #tpu.contract_precision<fp32>} : vector<8x256xf32>, vector<256x16xf32>, vector<8x16xf32> -> vector<8x16xf32>
    %cst_2 = arith.constant 6.250000e-02 : f32
    %15 = vector.broadcast %cst_2 : f32 to vector<8x16xf32>
    %16 = arith.mulf %14, %15 : vector<8x16xf32>
    %c0_3 = arith.constant 0 : index
    %c0_4 = arith.constant 0 : index
    %c0_5 = arith.constant 0 : index
    %17 = vector.load %arg2[%c0_3, %c0_4, %c0_5] : memref<8x1x16xf32, #tpu.memory_space<vmem>>, vector<8x1x16xf32>
    %18 = vector.shape_cast %17 : vector<8x1x16xf32> to vector<8x16xf32>
    %19 = vector.shape_cast %16 : vector<8x16xf32> to vector<8x1x16xf32>
    tpu.vector_store %arg2[%c0_3, %c0_4, %c0_5], %19 {strides = array<i32>} : memref<8x1x16xf32, #tpu.memory_space<vmem>>, vector<8x1x16xf32>,
    return
  }
  func.func @transform_0(%arg0: i32) -> (i32, i32) {
    %c0_i32 = arith.constant 0 : i32
    %c0_i32_0 = arith.constant 0 : i32
    return %arg0, %c0_i32 : i32, i32
  }
  func.func @transform_1(%arg0: i32) -> (i32, i32, i32) {
    %c0_i32 = arith.constant 0 : i32
    %c0_i32_0 = arith.constant 0 : i32
    %c0_i32_1 = arith.constant 0 : i32
    return %arg0, %c0_i32, %c0_i32_0 : i32, i32, i32
  }
}

</mosaic_0001>

<llo_original>
// kernel: tpu_custom_call.1
$region0: #{tpu_custom_call.1}
  #allocation0 [shape = 'u32[]', space=smem, size = 0x4, offset = 0x4, fixed_abs, tag = 'smem constant byte address 0x4 - core index']
  #allocation1 [shape = 'u32[144,128]{1,0:T(1,128)}', space=vmem, size = 0x12000, scoped, tag = 'internal scratch']
  %s0 = inlined_call_operand.hbm [shape: f32[8,256], index: 0, kind: input, shape index: {}]
  %s1 = inlined_call_operand.hbm [shape: f32[8,1,16], index: 1, kind: output, shape index: {}]
  %s2 = sld [smem:[#allocation0]]
  $region18: #{tpu_custom_call.1} parent=0
    _
  %s4 = ssub.s32 1, %s2
  %s5 = scalar_select 0, %s4, %s2
  $region1: #{tpu_custom_call.1} parent=0
    #allocation2 [shape = 'u8[8192]{0}', space=vmem, size = 0x2000, scoped, tag = 'input window, operand 0, single buffered']
    #allocation3 [shape = 's32[1]{0}', space=sflag, size = 0x4, scoped, tag = 'scoped memory for tpu_custom_call.1']
    #allocation4 [shape = 's32[1]{0}', space=sflag, size = 0x4, scoped, tag = 'scoped memory for tpu_custom_call.1']
    #allocation5 [shape = 'u8[4096]{0}', space=vmem, size = 0x1000, scoped, tag = 'output window, operand 0, single buffered']
    %6 = vsyncpa [#allocation3], 0
    %7 = vsyncpa [#allocation4], 0
    // Predicated region
    $region2: #{tpu_custom_call.1} parent=1 // pred_check
      _
    $region3: #{tpu_custom_call.1} parent=1 // pred_check_branch
      %9 = sbr.rel (0) target = $region5
    $region4: #{tpu_custom_call.1} parent=1 // pred_region
      %s11 = ssub.s32 256, 256
      %12 = vsyncadd [#allocation3], %s11
      %s14 = sshll.u32 [#allocation2], 4
      %s15 = int_to_ptr.vmem [resolvable:$true] %s14
      %17 = dma.hbm_to_vmem [thread:$0]  %s0, 256, %s15, [#allocation3]
    $region5: #{tpu_custom_call.1} parent=1 // pred_fallthru
      _
    // Predicated region
    $region6: #{tpu_custom_call.1} parent=1 // pred_check
      _
    $region7: #{tpu_custom_call.1} parent=1 // pred_check_branch
      %19 = sbr.rel (0) target = $region9
    $region8: #{tpu_custom_call.1} parent=1 // pred_region
      %20 = dma.done [#allocation3], 256
    $region9: #{tpu_custom_call.1} parent=1 // pred_fallthru
      _
    %v21 = vld [vmem:[#allocation2] sm:$0xff]
    %v22 = vld [vmem:[#allocation2 + $0x8] sm:$0xff]
    %v23 = vlaneseq
    %v24 = vshrl.u32 %v23, 7
    %v25 = vadd.s32 %v24, 8
    %v26 = vadd.s32 %v24, 16
    %v27 = vadd.s32 %v24, 24
    %v28 = vadd.s32 %v24, 32
    %v29 = vadd.s32 %v24, 40
    %v30 = vadd.s32 %v24, 48
    %v31 = vadd.s32 %v24, 56
    %v32 = vadd.s32 %v24, 64
    %v33 = vadd.s32 %v24, 72
    %v34 = vadd.s32 %v24, 80
    %v35 = vadd.s32 %v24, 88
    %v36 = vadd.s32 %v24, 96
    %v37 = vadd.s32 %v24, 104
    %v38 = vadd.s32 %v24, 112
    %v39 = vadd.s32 %v24, 120
    %v40 = vadd.s32 %v24, 128
    %v41 = vadd.s32 %v24, 136
    %v42 = vadd.s32 %v24, 144
    %v43 = vadd.s32 %v24, 152
    %v44 = vadd.s32 %v24, 160
    %v45 = vadd.s32 %v24, 168
    %v46 = vadd.s32 %v24, 176
    %v47 = vadd.s32 %v24, 184
    %v48 = vadd.s32 %v24, 192
    %v49 = vadd.s32 %v24, 200
    %v50 = vadd.s32 %v24, 208
    %v51 = vadd.s32 %v24, 216
    %v52 = vadd.s32 %v24, 224
    %v53 = vadd.s32 %v24, 232
    %v54 = vadd.s32 %v24, 240
    %v55 = vadd.s32 %v24, 248
    %v56 = vlaneseq
    %v57 = vand.u32 %v56, 127
    %v58 = vmul.u32 %v57, 16
    %vm59 = vcmp.ge.s32.totalorder %v24, %v58
    %vm60 = vcmp.ge.s32.totalorder %v25, %v58
    %vm61 = vcmp.ge.s32.totalorder %v26, %v58
    %vm62 = vcmp.ge.s32.totalorder %v27, %v58
    %vm63 = vcmp.ge.s32.totalorder %v28, %v58
    %vm64 = vcmp.ge.s32.totalorder %v29, %v58
    %vm65 = vcmp.ge.s32.totalorder %v30, %v58
    %vm66 = vcmp.ge.s32.totalorder %v31, %v58
    %vm67 = vcmp.ge.s32.totalorder %v32, %v58
    %vm68 = vcmp.ge.s32.totalorder %v33, %v58
    %vm69 = vcmp.ge.s32.totalorder %v34, %v58
    %vm70 = vcmp.ge.s32.totalorder %v35, %v58
    %vm71 = vcmp.ge.s32.totalorder %v36, %v58
    %vm72 = vcmp.ge.s32.totalorder %v37, %v58
    %vm73 = vcmp.ge.s32.totalorder %v38, %v58
    %vm74 = vcmp.ge.s32.totalorder %v39, %v58
    %vm75 = vcmp.ge.s32.totalorder %v40, %v58
    %vm76 = vcmp.ge.s32.totalorder %v41, %v58
    %vm77 = vcmp.ge.s32.totalorder %v42, %v58
    %vm78 = vcmp.ge.s32.totalorder %v43, %v58
    %vm79 = vcmp.ge.s32.totalorder %v44, %v58
    %vm80 = vcmp.ge.s32.totalorder %v45, %v58
    %vm81 = vcmp.ge.s32.totalorder %v46, %v58
    %vm82 = vcmp.ge.s32.totalorder %v47, %v58
    %vm83 = vcmp.ge.s32.totalorder %v48, %v58
    %vm84 = vcmp.ge.s32.totalorder %v49, %v58
    %vm85 = vcmp.ge.s32.totalorder %v50, %v58
    %vm86 = vcmp.ge.s32.totalorder %v51, %v58
    %vm87 = vcmp.ge.s32.totalorder %v52, %v58
    %vm88 = vcmp.ge.s32.totalorder %v53, %v58
    %vm89 = vcmp.ge.s32.totalorder %v54, %v58
    %vm90 = vcmp.ge.s32.totalorder %v55, %v58
    %v91 = vadd.s32 %v57, 1
    %v92 = vmul.u32 %v91, 16
    %vm93 = vcmp.lt.s32.totalorder %v24, %v92
    %vm94 = vcmp.lt.s32.totalorder %v25, %v92
    %vm95 = vcmp.lt.s32.totalorder %v26, %v92
    %vm96 = vcmp.lt.s32.totalorder %v27, %v92
    %vm97 = vcmp.lt.s32.totalorder %v28, %v92
    %vm98 = vcmp.lt.s32.totalorder %v29, %v92
    %vm99 = vcmp.lt.s32.totalorder %v30, %v92
    %vm100 = vcmp.lt.s32.totalorder %v31, %v92
    %vm101 = vcmp.lt.s32.totalorder %v32, %v92
    %vm102 = vcmp.lt.s32.totalorder %v33, %v92
    %vm103 = vcmp.lt.s32.totalorder %v34, %v92
    %vm104 = vcmp.lt.s32.totalorder %v35, %v92
    %vm105 = vcmp.lt.s32.totalorder %v36, %v92
    %vm106 = vcmp.lt.s32.totalorder %v37, %v92
    %vm107 = vcmp.lt.s32.totalorder %v38, %v92
    %vm108 = vcmp.lt.s32.totalorder %v39, %v92
    %vm109 = vcmp.lt.s32.totalorder %v40, %v92
    %vm110 = vcmp.lt.s32.totalorder %v41, %v92
    %vm111 = vcmp.lt.s32.totalorder %v42, %v92
    %vm112 = vcmp.lt.s32.totalorder %v43, %v92
    %vm113 = vcmp.lt.s32.totalorder %v44, %v92
    %vm114 = vcmp.lt.s32.totalorder %v45, %v92
    %vm115 = vcmp.lt.s32.totalorder %v46, %v92
    %vm116 = vcmp.lt.s32.totalorder %v47, %v92
    %vm117 = vcmp.lt.s32.totalorder %v48, %v92
    %vm118 = vcmp.lt.s32.totalorder %v49, %v92
    %vm119 = vcmp.lt.s32.totalorder %v50, %v92
    %vm120 = vcmp.lt.s32.totalorder %v51, %v92
    %vm121 = vcmp.lt.s32.totalorder %v52, %v92
    %vm122 = vcmp.lt.s32.totalorder %v53, %v92
    %vm123 = vcmp.lt.s32.totalorder %v54, %v92
    %vm124 = vcmp.lt.s32.totalorder %v55, %v92
    %vm125 = vmand %vm59, %vm93
    %vm126 = vmand %vm60, %vm94
    %vm127 = vmand %vm61, %vm95
    %vm128 = vmand %vm62, %vm96
    %vm129 = vmand %vm63, %vm97
    %vm130 = vmand %vm64, %vm98
    %vm131 = vmand %vm65, %vm99
    %vm132 = vmand %vm66, %vm100
    %vm133 = vmand %vm67, %vm101
    %vm134 = vmand %vm68, %vm102
    %vm135 = vmand %vm69, %vm103
    %vm136 = vmand %vm70, %vm104
    %vm137 = vmand %vm71, %vm105
    %vm138 = vmand %vm72, %vm106
    %vm139 = vmand %vm73, %vm107
    %vm140 = vmand %vm74, %vm108
    %vm141 = vmand %vm75, %vm109
    %vm142 = vmand %vm76, %vm110
    %vm143 = vmand %vm77, %vm111
    %vm144 = vmand %vm78, %vm112
    %vm145 = vmand %vm79, %vm113
    %vm146 = vmand %vm80, %vm114
    %vm147 = vmand %vm81, %vm115
    %vm148 = vmand %vm82, %vm116
    %vm149 = vmand %vm83, %vm117
    %vm150 = vmand %vm84, %vm118
    %vm151 = vmand %vm85, %vm119
    %vm152 = vmand %vm86, %vm120
    %vm153 = vmand %vm87, %vm121
    %vm154 = vmand %vm88, %vm122
    %vm155 = vmand %vm89, %vm123
    %vm156 = vmand %vm90, %vm124
    %v157 = vsel %vm125, 1, 0
    %v158 = vsel %vm126, 1, 0
    %v159 = vsel %vm127, 1, 0
    %v160 = vsel %vm128, 1, 0
    %v161 = vsel %vm129, 1, 0
    %v162 = vsel %vm130, 1, 0
    %v163 = vsel %vm131, 1, 0
    %v164 = vsel %vm132, 1, 0
    %v165 = vsel %vm133, 1, 0
    %v166 = vsel %vm134, 1, 0
    %v167 = vsel %vm135, 1, 0
    %v168 = vsel %vm136, 1, 0
    %v169 = vsel %vm137, 1, 0
    %v170 = vsel %vm138, 1, 0
    %v171 = vsel %vm139, 1, 0
    %v172 = vsel %vm140, 1, 0
    %v173 = vsel %vm141, 1, 0
    %v174 = vsel %vm142, 1, 0
    %v175 = vsel %vm143, 1, 0
    %v176 = vsel %vm144, 1, 0
    %v177 = vsel %vm145, 1, 0
    %v178 = vsel %vm146, 1, 0
    %v179 = vsel %vm147, 1, 0
    %v180 = vsel %vm148, 1, 0
    %v181 = vsel %vm149, 1, 0
    %v182 = vsel %vm150, 1, 0
    %v183 = vsel %vm151, 1, 0
    %v184 = vsel %vm152, 1, 0
    %v185 = vsel %vm153, 1, 0
    %v186 = vsel %vm154, 1, 0
    %v187 = vsel %vm155, 1, 0
    %v188 = vsel %vm156, 1, 0
    %v189 = vcvt.s32.f32 %v157
    %v190 = vcvt.s32.f32 %v158
    %v191 = vcvt.s32.f32 %v159
    %v192 = vcvt.s32.f32 %v160
    %v193 = vcvt.s32.f32 %v161
    %v194 = vcvt.s32.f32 %v162
    %v195 = vcvt.s32.f32 %v163
    %v196 = vcvt.s32.f32 %v164
    %v197 = vcvt.s32.f32 %v165
    %v198 = vcvt.s32.f32 %v166
    %v199 = vcvt.s32.f32 %v167
    %v200 = vcvt.s32.f32 %v168
    %v201 = vcvt.s32.f32 %v169
    %v202 = vcvt.s32.f32 %v170
    %v203 = vcvt.s32.f32 %v171
    %v204 = vcvt.s32.f32 %v172
    %v205 = vcvt.s32.f32 %v173
    %v206 = vcvt.s32.f32 %v174
    %v207 = vcvt.s32.f32 %v175
    %v208 = vcvt.s32.f32 %v176
    %v209 = vcvt.s32.f32 %v177
    %v210 = vcvt.s32.f32 %v178
    %v211 = vcvt.s32.f32 %v179
    %v212 = vcvt.s32.f32 %v180
    %v213 = vcvt.s32.f32 %v181
    %v214 = vcvt.s32.f32 %v182
    %v215 = vcvt.s32.f32 %v183
    %v216 = vcvt.s32.f32 %v184
    %v217 = vcvt.s32.f32 %v185
    %v218 = vcvt.s32.f32 %v186
    %v219 = vcvt.s32.f32 %v187
    %v220 = vcvt.s32.f32 %v188
    %221 = vmatprep.subr.mxu0 0.0
    %v222 = vand.u32 %v189, 4294901760
    %223 = vmatpush1.msra.mxu0 %v222
    %224 = vmatprep.subr.mxu0 0.0
    %v225 = vand.u32 %v190, 4294901760
    %226 = vmatpush1.msra.mxu0 %v225
    %227 = vmatprep.subr.mxu0 0.0
    %v228 = vand.u32 %v191, 4294901760
    %229 = vmatpush1.msra.mxu0 %v228
    %230 = vmatprep.subr.mxu0 0.0
    %v231 = vand.u32 %v192, 4294901760
    %232 = vmatpush1.msra.mxu0 %v231
    %233 = vmatprep.subr.mxu0 0.0
    %v234 = vand.u32 %v193, 4294901760
    %235 = vmatpush1.msra.mxu0 %v234
    %236 = vmatprep.subr.mxu0 0.0
    %v237 = vand.u32 %v194, 4294901760
    %238 = vmatpush1.msra.mxu0 %v237
    %239 = vmatprep.subr.mxu0 0.0
    %v240 = vand.u32 %v195, 4294901760
    %241 = vmatpush1.msra.mxu0 %v240
    %242 = vmatprep.subr.mxu0 0.0
    %v243 = vand.u32 %v196, 4294901760
    %244 = vmatpush1.msra.mxu0 %v243
    %245 = vmatprep.subr.mxu0 0.0
    %v246 = vand.u32 %v197, 4294901760
    %247 = vmatpush1.msra.mxu0 %v246
    %248 = vmatprep.subr.mxu0 0.0
    %v249 = vand.u32 %v198, 4294901760
    %250 = vmatpush1.msra.mxu0 %v249
    %251 = vmatprep.subr.mxu0 0.0
    %v252 = vand.u32 %v199, 4294901760
    %253 = vmatpush1.msra.mxu0 %v252
    %254 = vmatprep.subr.mxu0 0.0
    %v255 = vand.u32 %v200, 4294901760
    %256 = vmatpush1.msra.mxu0 %v255
    %257 = vmatprep.subr.mxu0 0.0
    %v258 = vand.u32 %v201, 4294901760
    %259 = vmatpush1.msra.mxu0 %v258
    %260 = vmatprep.subr.mxu0 0.0
    %v261 = vand.u32 %v202, 4294901760
    %262 = vmatpush1.msra.mxu0 %v261
    %263 = vmatprep.subr.mxu0 0.0
    %v264 = vand.u32 %v203, 4294901760
    %265 = vmatpush1.msra.mxu0 %v264
    %266 = vmatprep.subr.mxu0 0.0
    %v267 = vand.u32 %v204, 4294901760
    %268 = vmatpush1.msra.mxu0 %v267
    %269 = vmatprep.subr.mxu0 0.0
    %v270 = vand.u32 %v205, 4294901760
    %271 = vmatpush1.msra.mxu0 %v270
    %272 = vmatprep.subr.mxu0 0.0
    %v273 = vand.u32 %v206, 4294901760
    %274 = vmatpush1.msra.mxu0 %v273
    %275 = vmatprep.subr.mxu0 0.0
    %v276 = vand.u32 %v207, 4294901760
    %277 = vmatpush1.msra.mxu0 %v276
    %278 = vmatprep.subr.mxu0 0.0
    %v279 = vand.u32 %v208, 4294901760
    %280 = vmatpush1.msra.mxu0 %v279
    %281 = vmatprep.subr.mxu0 0.0
    %v282 = vand.u32 %v209, 4294901760
    %283 = vmatpush1.msra.mxu0 %v282
    %284 = vmatprep.subr.mxu0 0.0
    %v285 = vand.u32 %v210, 4294901760
    %286 = vmatpush1.msra.mxu0 %v285
    %287 = vmatprep.subr.mxu0 0.0
    %v288 = vand.u32 %v211, 4294901760
    %289 = vmatpush1.msra.mxu0 %v288
    %290 = vmatprep.subr.mxu0 0.0
    %v291 = vand.u32 %v212, 4294901760
    %292 = vmatpush1.msra.mxu0 %v291
    %293 = vmatprep.subr.mxu0 0.0
    %v294 = vand.u32 %v213, 4294901760
    %295 = vmatpush1.msra.mxu0 %v294
    %296 = vmatprep.subr.mxu0 0.0
    %v297 = vand.u32 %v214, 4294901760
    %298 = vmatpush1.msra.mxu0 %v297
    %299 = vmatprep.subr.mxu0 0.0
    %v300 = vand.u32 %v215, 4294901760
    %301 = vmatpush1.msra.mxu0 %v300
    %302 = vmatprep.subr.mxu0 0.0
    %v303 = vand.u32 %v216, 4294901760
    %304 = vmatpush1.msra.mxu0 %v303
    %305 = vmatprep.subr.mxu0 0.0
    %v306 = vand.u32 %v217, 4294901760
    %307 = vmatpush1.msra.mxu0 %v306
    %308 = vmatprep.subr.mxu0 0.0
    %v309 = vand.u32 %v218, 4294901760
    %310 = vmatpush1.msra.mxu0 %v309
    %311 = vmatprep.subr.mxu0 0.0
    %v312 = vand.u32 %v219, 4294901760
    %313 = vmatpush1.msra.mxu0 %v312
    %314 = vmatprep.subr.mxu0 0.0
    %v315 = vand.u32 %v220, 4294901760
    %316 = vmatpush1.msra.mxu0 %v315
    %v317 = vand.u32 %v22, 4294901760
    %v318 = vsub.f32 %v22, %v317
    %v319 = vand.u32 %v318, 4294901760
    %v320 = vsub.f32 %v318, %v319
    %v321 = vand.u32 %v320, 4294901760
    %322 = vmatprep.mubr.f32.mxu0 %v321
    %v323 = vand.u32 %v21, 4294901760
    %v324 = vsub.f32 %v21, %v323
    %v325 = vand.u32 %v324, 4294901760
    %v326 = vsub.f32 %v324, %v325
    %v327 = vand.u32 %v326, 4294901760
    %328 = vmatmul.mubr.f32.gmra.mrb[0].mxu0 %v327
    %v329 = vpop.f32.mrb[0].mxu0
    %v330 = vadd.f32 0.0, %v329
    %v331 = vpop.f32.mrb[0].mxu0
    %332 = vdwg.mxu0
    %333 = vmatprep.subr.mxu0 0.0
    %v334 = vand.u32 %v189, 4294901760
    %v335 = vsub.f32 %v189, %v334
    %v336 = vand.u32 %v335, 4294901760
    %v337 = vsub.f32 %v335, %v336
    %v338 = vand.u32 %v337, 4294901760
    %339 = vmatpush1.msra.mxu0 %v338
    %340 = vmatprep.subr.mxu0 0.0
    %v341 = vand.u32 %v190, 4294901760
    %v342 = vsub.f32 %v190, %v341
    %v343 = vand.u32 %v342, 4294901760
    %v344 = vsub.f32 %v342, %v343
    %v345 = vand.u32 %v344, 4294901760
    %346 = vmatpush1.msra.mxu0 %v345
    %347 = vmatprep.subr.mxu0 0.0
    %v348 = vand.u32 %v191, 4294901760
    %v349 = vsub.f32 %v191, %v348
    %v350 = vand.u32 %v349, 4294901760
    %v351 = vsub.f32 %v349, %v350
    %v352 = vand.u32 %v351, 4294901760
    %353 = vmatpush1.msra.mxu0 %v352
    %354 = vmatprep.subr.mxu0 0.0
    %v355 = vand.u32 %v192, 4294901760
    %v356 = vsub.f32 %v192, %v355
    %v357 = vand.u32 %v356, 4294901760
    %v358 = vsub.f32 %v356, %v357
    %v359 = vand.u32 %v358, 4294901760
    %360 = vmatpush1.msra.mxu0 %v359
    %361 = vmatprep.subr.mxu0 0.0
    %v362 = vand.u32 %v193, 4294901760
    %v363 = vsub.f32 %v193, %v362
    %v364 = vand.u32 %v363, 4294901760
    %v365 = vsub.f32 %v363, %v364
    %v366 = vand.u32 %v365, 4294901760
    %367 = vmatpush1.msra.mxu0 %v366
    %368 = vmatprep.subr.mxu0 0.0
    %v369 = vand.u32 %v194, 4294901760
    %v370 = vsub.f32 %v194, %v369
    %v371 = vand.u32 %v370, 4294901760
    %v372 = vsub.f32 %v370, %v371
    %v373 = vand.u32 %v372, 4294901760
    %374 = vmatpush1.msra.mxu0 %v373
    %375 = vmatprep.subr.mxu0 0.0
    %v376 = vand.u32 %v195, 4294901760
    %v377 = vsub.f32 %v195, %v376
    %v378 = vand.u32 %v377, 4294901760
    %v379 = vsub.f32 %v377, %v378
    %v380 = vand.u32 %v379, 4294901760
    %381 = vmatpush1.msra.mxu0 %v380
    %382 = vmatprep.subr.mxu0 0.0
    %v383 = vand.u32 %v196, 4294901760
    %v384 = vsub.f32 %v196, %v383
    %v385 = vand.u32 %v384, 4294901760
    %v386 = vsub.f32 %v384, %v385
    %v387 = vand.u32 %v386, 4294901760
    %388 = vmatpush1.msra.mxu0 %v387
    %389 = vmatprep.subr.mxu0 0.0
    %v390 = vand.u32 %v197, 4294901760
    %v391 = vsub.f32 %v197, %v390
    %v392 = vand.u32 %v391, 4294901760
    %v393 = vsub.f32 %v391, %v392
    %v394 = vand.u32 %v393, 4294901760
    %395 = vmatpush1.msra.mxu0 %v394
    %396 = vmatprep.subr.mxu0 0.0
    %v397 = vand.u32 %v198, 4294901760
    %v398 = vsub.f32 %v198, %v397
    %v399 = vand.u32 %v398, 4294901760
    %v400 = vsub.f32 %v398, %v399
    %v401 = vand.u32 %v400, 4294901760
    %402 = vmatpush1.msra.mxu0 %v401
    %403 = vmatprep.subr.mxu0 0.0
    %v404 = vand.u32 %v199, 4294901760
    %v405 = vsub.f32 %v199, %v404
    %v406 = vand.u32 %v405, 4294901760
    %v407 = vsub.f32 %v405, %v406
    %v408 = vand.u32 %v407, 4294901760
    %409 = vmatpush1.msra.mxu0 %v408
    %410 = vmatprep.subr.mxu0 0.0
    %v411 = vand.u32 %v200, 4294901760
    %v412 = vsub.f32 %v200, %v411
    %v413 = vand.u32 %v412, 4294901760
    %v414 = vsub.f32 %v412, %v413
    %v415 = vand.u32 %v414, 4294901760
    %416 = vmatpush1.msra.mxu0 %v415
    %417 = vmatprep.subr.mxu0 0.0
    %v418 = vand.u32 %v201, 4294901760
    %v419 = vsub.f32 %v201, %v418
    %v420 = vand.u32 %v419, 4294901760
    %v421 = vsub.f32 %v419, %v420
    %v422 = vand.u32 %v421, 4294901760
    %423 = vmatpush1.msra.mxu0 %v422
    %424 = vmatprep.subr.mxu0 0.0
    %v425 = vand.u32 %v202, 4294901760
    %v426 = vsub.f32 %v202, %v425
    %v427 = vand.u32 %v426, 4294901760
    %v428 = vsub.f32 %v426, %v427
    %v429 = vand.u32 %v428, 4294901760
    %430 = vmatpush1.msra.mxu0 %v429
    %431 = vmatprep.subr.mxu0 0.0
    %v432 = vand.u32 %v203, 4294901760
    %v433 = vsub.f32 %v203, %v432
    %v434 = vand.u32 %v433, 4294901760
    %v435 = vsub.f32 %v433, %v434
    %v436 = vand.u32 %v435, 4294901760
    %437 = vmatpush1.msra.mxu0 %v436
    %438 = vmatprep.subr.mxu0 0.0
    %v439 = vand.u32 %v204, 4294901760
    %v440 = vsub.f32 %v204, %v439
    %v441 = vand.u32 %v440, 4294901760
    %v442 = vsub.f32 %v440, %v441
    %v443 = vand.u32 %v442, 4294901760
    %444 = vmatpush1.msra.mxu0 %v443
    %445 = vmatprep.subr.mxu0 0.0
    %v446 = vand.u32 %v205, 4294901760
    %v447 = vsub.f32 %v205, %v446
    %v448 = vand.u32 %v447, 4294901760
    %v449 = vsub.f32 %v447, %v448
    %v450 = vand.u32 %v449, 4294901760
    %451 = vmatpush1.msra.mxu0 %v450
    %452 = vmatprep.subr.mxu0 0.0
    %v453 = vand.u32 %v206, 4294901760
    %v454 = vsub.f32 %v206, %v453
    %v455 = vand.u32 %v454, 4294901760
    %v456 = vsub.f32 %v454, %v455
    %v457 = vand.u32 %v456, 4294901760
    %458 = vmatpush1.msra.mxu0 %v457
    %459 = vmatprep.subr.mxu0 0.0
    %v460 = vand.u32 %v207, 4294901760
    %v461 = vsub.f32 %v207, %v460
    %v462 = vand.u32 %v461, 4294901760
    %v463 = vsub.f32 %v461, %v462
    %v464 = vand.u32 %v463, 4294901760
    %465 = vmatpush1.msra.mxu0 %v464
    %466 = vmatprep.subr.mxu0 0.0
    %v467 = vand.u32 %v208, 4294901760
    %v468 = vsub.f32 %v208, %v467
    %v469 = vand.u32 %v468, 4294901760
    %v470 = vsub.f32 %v468, %v469
    %v471 = vand.u32 %v470, 4294901760
    %472 = vmatpush1.msra.mxu0 %v471
    %473 = vmatprep.subr.mxu0 0.0
    %v474 = vand.u32 %v209, 4294901760
    %v475 = vsub.f32 %v209, %v474
    %v476 = vand.u32 %v475, 4294901760
    %v477 = vsub.f32 %v475, %v476
    %v478 = vand.u32 %v477, 4294901760
    %479 = vmatpush1.msra.mxu0 %v478
    %480 = vmatprep.subr.mxu0 0.0
    %v481 = vand.u32 %v210, 4294901760
    %v482 = vsub.f32 %v210, %v481
    %v483 = vand.u32 %v482, 4294901760
    %v484 = vsub.f32 %v482, %v483
    %v485 = vand.u32 %v484, 4294901760
    %486 = vmatpush1.msra.mxu0 %v485
    %487 = vmatprep.subr.mxu0 0.0
    %v488 = vand.u32 %v211, 4294901760
    %v489 = vsub.f32 %v211, %v488
    %v490 = vand.u32 %v489, 4294901760
    %v491 = vsub.f32 %v489, %v490
    %v492 = vand.u32 %v491, 4294901760
    %493 = vmatpush1.msra.mxu0 %v492
    %494 = vmatprep.subr.mxu0 0.0
    %v495 = vand.u32 %v212, 4294901760
    %v496 = vsub.f32 %v212, %v495
    %v497 = vand.u32 %v496, 4294901760
    %v498 = vsub.f32 %v496, %v497
    %v499 = vand.u32 %v498, 4294901760
    %500 = vmatpush1.msra.mxu0 %v499
    %501 = vmatprep.subr.mxu0 0.0
    %v502 = vand.u32 %v213, 4294901760
    %v503 = vsub.f32 %v213, %v502
    %v504 = vand.u32 %v503, 4294901760
    %v505 = vsub.f32 %v503, %v504
    %v506 = vand.u32 %v505, 4294901760
    %507 = vmatpush1.msra.mxu0 %v506
    %508 = vmatprep.subr.mxu0 0.0
    %v509 = vand.u32 %v214, 4294901760
    %v510 = vsub.f32 %v214, %v509
    %v511 = vand.u32 %v510, 4294901760
    %v512 = vsub.f32 %v510, %v511
    %v513 = vand.u32 %v512, 4294901760
    %514 = vmatpush1.msra.mxu0 %v513
    %515 = vmatprep.subr.mxu0 0.0
    %v516 = vand.u32 %v215, 4294901760
    %v517 = vsub.f32 %v215, %v516
    %v518 = vand.u32 %v517, 4294901760
    %v519 = vsub.f32 %v517, %v518
    %v520 = vand.u32 %v519, 4294901760
    %521 = vmatpush1.msra.mxu0 %v520
    %522 = vmatprep.subr.mxu0 0.0
    %v523 = vand.u32 %v216, 4294901760
    %v524 = vsub.f32 %v216, %v523
    %v525 = vand.u32 %v524, 4294901760
    %v526 = vsub.f32 %v524, %v525
    %v527 = vand.u32 %v526, 4294901760
    %528 = vmatpush1.msra.mxu0 %v527
    %529 = vmatprep.subr.mxu0 0.0
    %v530 = vand.u32 %v217, 4294901760
    %v531 = vsub.f32 %v217, %v530
    %v532 = vand.u32 %v531, 4294901760
    %v533 = vsub.f32 %v531, %v532
    %v534 = vand.u32 %v533, 4294901760
    %535 = vmatpush1.msra.mxu0 %v534
    %536 = vmatprep.subr.mxu0 0.0
    %v537 = vand.u32 %v218, 4294901760
    %v538 = vsub.f32 %v218, %v537
    %v539 = vand.u32 %v538, 4294901760
    %v540 = vsub.f32 %v538, %v539
    %v541 = vand.u32 %v540, 4294901760
    %542 = vmatpush1.msra.mxu0 %v541
    %543 = vmatprep.subr.mxu0 0.0
    %v544 = vand.u32 %v219, 4294901760
    %v545 = vsub.f32 %v219, %v544
    %v546 = vand.u32 %v545, 4294901760
    %v547 = vsub.f32 %v545, %v546
    %v548 = vand.u32 %v547, 4294901760
    %549 = vmatpush1.msra.mxu0 %v548
    %550 = vmatprep.subr.mxu0 0.0
    %v551 = vand.u32 %v220, 4294901760
    %v552 = vsub.f32 %v220, %v551
    %v553 = vand.u32 %v552, 4294901760
    %v554 = vsub.f32 %v552, %v553
    %v555 = vand.u32 %v554, 4294901760
    %556 = vmatpush1.msra.mxu0 %v555
    %v557 = vand.u32 %v22, 4294901760
    %558 = vmatprep.mubr.f32.mxu0 %v557
    %v559 = vand.u32 %v21, 4294901760
    %560 = vmatmul.mubr.f32.gmra.mrb[0].mxu0 %v559
    %v561 = vpop.f32.mrb[0].mxu0
    %v562 = vadd.f32 %v330, %v561
    %v563 = vpop.f32.mrb[0].mxu0
    %564 = vdwg.mxu0
    %565 = vmatprep.subr.mxu0 0.0
    %v566 = vand.u32 %v189, 4294901760
    %v567 = vsub.f32 %v189, %v566
    %568 = vmatpush1.msra.mxu0 %v567
    %569 = vmatprep.subr.mxu0 0.0
    %v570 = vand.u32 %v190, 4294901760
    %v571 = vsub.f32 %v190, %v570
    %572 = vmatpush1.msra.mxu0 %v571
    %573 = vmatprep.subr.mxu0 0.0
    %v574 = vand.u32 %v191, 4294901760
    %v575 = vsub.f32 %v191, %v574
    %576 = vmatpush1.msra.mxu0 %v575
    %577 = vmatprep.subr.mxu0 0.0
    %v578 = vand.u32 %v192, 4294901760
    %v579 = vsub.f32 %v192, %v578
    %580 = vmatpush1.msra.mxu0 %v579
    %581 = vmatprep.subr.mxu0 0.0
    %v582 = vand.u32 %v193, 4294901760
    %v583 = vsub.f32 %v193, %v582
    %584 = vmatpush1.msra.mxu0 %v583
    %585 = vmatprep.subr.mxu0 0.0
    %v586 = vand.u32 %v194, 4294901760
    %v587 = vsub.f32 %v194, %v586
    %588 = vmatpush1.msra.mxu0 %v587
    %589 = vmatprep.subr.mxu0 0.0
    %v590 = vand.u32 %v195, 4294901760
    %v591 = vsub.f32 %v195, %v590
    %592 = vmatpush1.msra.mxu0 %v591
    %593 = vmatprep.subr.mxu0 0.0
    %v594 = vand.u32 %v196, 4294901760
    %v595 = vsub.f32 %v196, %v594
    %596 = vmatpush1.msra.mxu0 %v595
    %597 = vmatprep.subr.mxu0 0.0
    %v598 = vand.u32 %v197, 4294901760
    %v599 = vsub.f32 %v197, %v598
    %600 = vmatpush1.msra.mxu0 %v599
    %601 = vmatprep.subr.mxu0 0.0
    %v602 = vand.u32 %v198, 4294901760
    %v603 = vsub.f32 %v198, %v602
    %604 = vmatpush1.msra.mxu0 %v603
    %605 = vmatprep.subr.mxu0 0.0
    %v606 = vand.u32 %v199, 4294901760
    %v607 = vsub.f32 %v199, %v606
    %608 = vmatpush1.msra.mxu0 %v607
    %609 = vmatprep.subr.mxu0 0.0
    %v610 = vand.u32 %v200, 4294901760
    %v611 = vsub.f32 %v200, %v610
    %612 = vmatpush1.msra.mxu0 %v611
    %613 = vmatprep.subr.mxu0 0.0
    %v614 = vand.u32 %v201, 4294901760
    %v615 = vsub.f32 %v201, %v614
    %616 = vmatpush1.msra.mxu0 %v615
    %617 = vmatprep.subr.mxu0 0.0
    %v618 = vand.u32 %v202, 4294901760
    %v619 = vsub.f32 %v202, %v618
    %620 = vmatpush1.msra.mxu0 %v619
    %621 = vmatprep.subr.mxu0 0.0
    %v622 = vand.u32 %v203, 4294901760
    %v623 = vsub.f32 %v203, %v622
    %624 = vmatpush1.msra.mxu0 %v623
    %625 = vmatprep.subr.mxu0 0.0
    %v626 = vand.u32 %v204, 4294901760
    %v627 = vsub.f32 %v204, %v626
    %628 = vmatpush1.msra.mxu0 %v627
    %629 = vmatprep.subr.mxu0 0.0
    %v630 = vand.u32 %v205, 4294901760
    %v631 = vsub.f32 %v205, %v630
    %632 = vmatpush1.msra.mxu0 %v631
    %633 = vmatprep.subr.mxu0 0.0
    %v634 = vand.u32 %v206, 4294901760
    %v635 = vsub.f32 %v206, %v634
    %636 = vmatpush1.msra.mxu0 %v635
    %637 = vmatprep.subr.mxu0 0.0
    %v638 = vand.u32 %v207, 4294901760
    %v639 = vsub.f32 %v207, %v638
    %640 = vmatpush1.msra.mxu0 %v639
    %641 = vmatprep.subr.mxu0 0.0
    %v642 = vand.u32 %v208, 4294901760
    %v643 = vsub.f32 %v208, %v642
    %644 = vmatpush1.msra.mxu0 %v643
    %645 = vmatprep.subr.mxu0 0.0
    %v646 = vand.u32 %v209, 4294901760
    %v647 = vsub.f32 %v209, %v646
    %648 = vmatpush1.msra.mxu0 %v647
    %649 = vmatprep.subr.mxu0 0.0
    %v650 = vand.u32 %v210, 4294901760
    %v651 = vsub.f32 %v210, %v650
    %652 = vmatpush1.msra.mxu0 %v651
    %653 = vmatprep.subr.mxu0 0.0
    %v654 = vand.u32 %v211, 4294901760
    %v655 = vsub.f32 %v211, %v654
    %656 = vmatpush1.msra.mxu0 %v655
    %657 = vmatprep.subr.mxu0 0.0
    %v658 = vand.u32 %v212, 4294901760
    %v659 = vsub.f32 %v212, %v658
    %660 = vmatpush1.msra.mxu0 %v659
    %661 = vmatprep.subr.mxu0 0.0
    %v662 = vand.u32 %v213, 4294901760
    %v663 = vsub.f32 %v213, %v662
    %664 = vmatpush1.msra.mxu0 %v663
    %665 = vmatprep.subr.mxu0 0.0
    %v666 = vand.u32 %v214, 4294901760
    %v667 = vsub.f32 %v214, %v666
    %668 = vmatpush1.msra.mxu0 %v667
    %669 = vmatprep.subr.mxu0 0.0
    %v670 = vand.u32 %v215, 4294901760
    %v671 = vsub.f32 %v215, %v670
    %672 = vmatpush1.msra.mxu0 %v671
    %673 = vmatprep.subr.mxu0 0.0
    %v674 = vand.u32 %v216, 4294901760
    %v675 = vsub.f32 %v216, %v674
    %676 = vmatpush1.msra.mxu0 %v675
    %677 = vmatprep.subr.mxu0 0.0
    %v678 = vand.u32 %v217, 4294901760
    %v679 = vsub.f32 %v217, %v678
    %680 = vmatpush1.msra.mxu0 %v679
    %681 = vmatprep.subr.mxu0 0.0
    %v682 = vand.u32 %v218, 4294901760
    %v683 = vsub.f32 %v218, %v682
    %684 = vmatpush1.msra.mxu0 %v683
    %685 = vmatprep.subr.mxu0 0.0
    %v686 = vand.u32 %v219, 4294901760
    %v687 = vsub.f32 %v219, %v686
    %688 = vmatpush1.msra.mxu0 %v687
    %689 = vmatprep.subr.mxu0 0.0
    %v690 = vand.u32 %v220, 4294901760
    %v691 = vsub.f32 %v220, %v690
    %692 = vmatpush1.msra.mxu0 %v691
    %v693 = vand.u32 %v22, 4294901760
    %v694 = vsub.f32 %v22, %v693
    %695 = vmatprep.mubr.f32.mxu0 %v694
    %v696 = vand.u32 %v21, 4294901760
    %v697 = vsub.f32 %v21, %v696
    %698 = vmatmul.mubr.f32.gmra.mrb[0].mxu0 %v697
    %v699 = vpop.f32.mrb[0].mxu0
    %v700 = vadd.f32 %v562, %v699
    %v701 = vpop.f32.mrb[0].mxu0
    %702 = vdwg.mxu0
    %703 = vmatprep.subr.mxu0 0.0
    %v704 = vand.u32 %v189, 4294901760
    %705 = vmatpush1.msra.mxu0 %v704
    %706 = vmatprep.subr.mxu0 0.0
    %v707 = vand.u32 %v190, 4294901760
    %708 = vmatpush1.msra.mxu0 %v707
    %709 = vmatprep.subr.mxu0 0.0
    %v710 = vand.u32 %v191, 4294901760
    %711 = vmatpush1.msra.mxu0 %v710
    %712 = vmatprep.subr.mxu0 0.0
    %v713 = vand.u32 %v192, 4294901760
    %714 = vmatpush1.msra.mxu0 %v713
    %715 = vmatprep.subr.mxu0 0.0
    %v716 = vand.u32 %v193, 4294901760
    %717 = vmatpush1.msra.mxu0 %v716
    %718 = vmatprep.subr.mxu0 0.0
    %v719 = vand.u32 %v194, 4294901760
    %720 = vmatpush1.msra.mxu0 %v719
    %721 = vmatprep.subr.mxu0 0.0
    %v722 = vand.u32 %v195, 4294901760
    %723 = vmatpush1.msra.mxu0 %v722
    %724 = vmatprep.subr.mxu0 0.0
    %v725 = vand.u32 %v196, 4294901760
    %726 = vmatpush1.msra.mxu0 %v725
    %727 = vmatprep.subr.mxu0 0.0
    %v728 = vand.u32 %v197, 4294901760
    %729 = vmatpush1.msra.mxu0 %v728
    %730 = vmatprep.subr.mxu0 0.0
    %v731 = vand.u32 %v198, 4294901760
    %732 = vmatpush1.msra.mxu0 %v731
    %733 = vmatprep.subr.mxu0 0.0
    %v734 = vand.u32 %v199, 4294901760
    %735 = vmatpush1.msra.mxu0 %v734
    %736 = vmatprep.subr.mxu0 0.0
    %v737 = vand.u32 %v200, 4294901760
    %738 = vmatpush1.msra.mxu0 %v737
    %739 = vmatprep.subr.mxu0 0.0
    %v740 = vand.u32 %v201, 4294901760
    %741 = vmatpush1.msra.mxu0 %v740
    %742 = vmatprep.subr.mxu0 0.0
    %v743 = vand.u32 %v202, 4294901760
    %744 = vmatpush1.msra.mxu0 %v743
    %745 = vmatprep.subr.mxu0 0.0
    %v746 = vand.u32 %v203, 4294901760
    %747 = vmatpush1.msra.mxu0 %v746
    %748 = vmatprep.subr.mxu0 0.0
    %v749 = vand.u32 %v204, 4294901760
    %750 = vmatpush1.msra.mxu0 %v749
    %751 = vmatprep.subr.mxu0 0.0
    %v752 = vand.u32 %v205, 4294901760
    %753 = vmatpush1.msra.mxu0 %v752
    %754 = vmatprep.subr.mxu0 0.0
    %v755 = vand.u32 %v206, 4294901760
    %756 = vmatpush1.msra.mxu0 %v755
    %757 = vmatprep.subr.mxu0 0.0
    %v758 = vand.u32 %v207, 4294901760
    %759 = vmatpush1.msra.mxu0 %v758
    %760 = vmatprep.subr.mxu0 0.0
    %v761 = vand.u32 %v208, 4294901760
    %762 = vmatpush1.msra.mxu0 %v761
    %763 = vmatprep.subr.mxu0 0.0
    %v764 = vand.u32 %v209, 4294901760
    %765 = vmatpush1.msra.mxu0 %v764
    %766 = vmatprep.subr.mxu0 0.0
    %v767 = vand.u32 %v210, 4294901760
    %768 = vmatpush1.msra.mxu0 %v767
    %769 = vmatprep.subr.mxu0 0.0
    %v770 = vand.u32 %v211, 4294901760
    %771 = vmatpush1.msra.mxu0 %v770
    %772 = vmatprep.subr.mxu0 0.0
    %v773 = vand.u32 %v212, 4294901760
    %774 = vmatpush1.msra.mxu0 %v773
    %775 = vmatprep.subr.mxu0 0.0
    %v776 = vand.u32 %v213, 4294901760
    %777 = vmatpush1.msra.mxu0 %v776
    %778 = vmatprep.subr.mxu0 0.0
    %v779 = vand.u32 %v214, 4294901760
    %780 = vmatpush1.msra.mxu0 %v779
    %781 = vmatprep.subr.mxu0 0.0
    %v782 = vand.u32 %v215, 4294901760
    %783 = vmatpush1.msra.mxu0 %v782
    %784 = vmatprep.subr.mxu0 0.0
    %v785 = vand.u32 %v216, 4294901760
    %786 = vmatpush1.msra.mxu0 %v785
    %787 = vmatprep.subr.mxu0 0.0
    %v788 = vand.u32 %v217, 4294901760
    %789 = vmatpush1.msra.mxu0 %v788
    %790 = vmatprep.subr.mxu0 0.0
    %v791 = vand.u32 %v218, 4294901760
    %792 = vmatpush1.msra.mxu0 %v791
    %793 = vmatprep.subr.mxu0 0.0
    %v794 = vand.u32 %v219, 4294901760
    %795 = vmatpush1.msra.mxu0 %v794
    %796 = vmatprep.subr.mxu0 0.0
    %v797 = vand.u32 %v220, 4294901760
    %798 = vmatpush1.msra.mxu0 %v797
    %v799 = vand.u32 %v22, 4294901760
    %v800 = vsub.f32 %v22, %v799
    %v801 = vand.u32 %v800, 4294901760
    %802 = vmatprep.mubr.f32.mxu0 %v801
    %v803 = vand.u32 %v21, 4294901760
    %v804 = vsub.f32 %v21, %v803
    %v805 = vand.u32 %v804, 4294901760
    %806 = vmatmul.mubr.f32.gmra.mrb[0].mxu0 %v805
    %v807 = vpop.f32.mrb[0].mxu0
    %v808 = vadd.f32 %v700, %v807
    %v809 = vpop.f32.mrb[0].mxu0
    %810 = vdwg.mxu0
    %811 = vmatprep.subr.mxu0 0.0
    %v812 = vand.u32 %v189, 4294901760
    %v813 = vsub.f32 %v189, %v812
    %v814 = vand.u32 %v813, 4294901760
    %815 = vmatpush1.msra.mxu0 %v814
    %816 = vmatprep.subr.mxu0 0.0
    %v817 = vand.u32 %v190, 4294901760
    %v818 = vsub.f32 %v190, %v817
    %v819 = vand.u32 %v818, 4294901760
    %820 = vmatpush1.msra.mxu0 %v819
    %821 = vmatprep.subr.mxu0 0.0
    %v822 = vand.u32 %v191, 4294901760
    %v823 = vsub.f32 %v191, %v822
    %v824 = vand.u32 %v823, 4294901760
    %825 = vmatpush1.msra.mxu0 %v824
    %826 = vmatprep.subr.mxu0 0.0
    %v827 = vand.u32 %v192, 4294901760
    %v828 = vsub.f32 %v192, %v827
    %v829 = vand.u32 %v828, 4294901760
    %830 = vmatpush1.msra.mxu0 %v829
    %831 = vmatprep.subr.mxu0 0.0
    %v832 = vand.u32 %v193, 4294901760
    %v833 = vsub.f32 %v193, %v832
    %v834 = vand.u32 %v833, 4294901760
    %835 = vmatpush1.msra.mxu0 %v834
    %836 = vmatprep.subr.mxu0 0.0
    %v837 = vand.u32 %v194, 4294901760
    %v838 = vsub.f32 %v194, %v837
    %v839 = vand.u32 %v838, 4294901760
    %840 = vmatpush1.msra.mxu0 %v839
    %841 = vmatprep.subr.mxu0 0.0
    %v842 = vand.u32 %v195, 4294901760
    %v843 = vsub.f32 %v195, %v842
    %v844 = vand.u32 %v843, 4294901760
    %845 = vmatpush1.msra.mxu0 %v844
    %846 = vmatprep.subr.mxu0 0.0
    %v847 = vand.u32 %v196, 4294901760
    %v848 = vsub.f32 %v196, %v847
    %v849 = vand.u32 %v848, 4294901760
    %850 = vmatpush1.msra.mxu0 %v849
    %851 = vmatprep.subr.mxu0 0.0
    %v852 = vand.u32 %v197, 4294901760
    %v853 = vsub.f32 %v197, %v852
    %v854 = vand.u32 %v853, 4294901760
    %855 = vmatpush1.msra.mxu0 %v854
    %856 = vmatprep.subr.mxu0 0.0
    %v857 = vand.u32 %v198, 4294901760
    %v858 = vsub.f32 %v198, %v857
    %v859 = vand.u32 %v858, 4294901760
    %860 = vmatpush1.msra.mxu0 %v859
    %861 = vmatprep.subr.mxu0 0.0
    %v862 = vand.u32 %v199, 4294901760
    %v863 = vsub.f32 %v199, %v862
    %v864 = vand.u32 %v863, 4294901760
    %865 = vmatpush1.msra.mxu0 %v864
    %866 = vmatprep.subr.mxu0 0.0
    %v867 = vand.u32 %v200, 4294901760
    %v868 = vsub.f32 %v200, %v867
    %v869 = vand.u32 %v868, 4294901760
    %870 = vmatpush1.msra.mxu0 %v869
    %871 = vmatprep.subr.mxu0 0.0
    %v872 = vand.u32 %v201, 4294901760
    %v873 = vsub.f32 %v201, %v872
    %v874 = vand.u32 %v873, 4294901760
    %875 = vmatpush1.msra.mxu0 %v874
    %876 = vmatprep.subr.mxu0 0.0
    %v877 = vand.u32 %v202, 4294901760
    %v878 = vsub.f32 %v202, %v877
    %v879 = vand.u32 %v878, 4294901760
    %880 = vmatpush1.msra.mxu0 %v879
    %881 = vmatprep.subr.mxu0 0.0
    %v882 = vand.u32 %v203, 4294901760
    %v883 = vsub.f32 %v203, %v882
    %v884 = vand.u32 %v883, 4294901760
    %885 = vmatpush1.msra.mxu0 %v884
    %886 = vmatprep.subr.mxu0 0.0
    %v887 = vand.u32 %v204, 4294901760
    %v888 = vsub.f32 %v204, %v887
    %v889 = vand.u32 %v888, 4294901760
    %890 = vmatpush1.msra.mxu0 %v889
    %891 = vmatprep.subr.mxu0 0.0
    %v892 = vand.u32 %v205, 4294901760
    %v893 = vsub.f32 %v205, %v892
    %v894 = vand.u32 %v893, 4294901760
    %895 = vmatpush1.msra.mxu0 %v894
    %896 = vmatprep.subr.mxu0 0.0
    %v897 = vand.u32 %v206, 4294901760
    %v898 = vsub.f32 %v206, %v897
    %v899 = vand.u32 %v898, 4294901760
    %900 = vmatpush1.msra.mxu0 %v899
    %901 = vmatprep.subr.mxu0 0.0
    %v902 = vand.u32 %v207, 4294901760
    %v903 = vsub.f32 %v207, %v902
    %v904 = vand.u32 %v903, 4294901760
    %905 = vmatpush1.msra.mxu0 %v904
    %906 = vmatprep.subr.mxu0 0.0
    %v907 = vand.u32 %v208, 4294901760
    %v908 = vsub.f32 %v208, %v907
    %v909 = vand.u32 %v908, 4294901760
    %910 = vmatpush1.msra.mxu0 %v909
    %911 = vmatprep.subr.mxu0 0.0
    %v912 = vand.u32 %v209, 4294901760
    %v913 = vsub.f32 %v209, %v912
    %v914 = vand.u32 %v913, 4294901760
    %915 = vmatpush1.msra.mxu0 %v914
    %916 = vmatprep.subr.mxu0 0.0
    %v917 = vand.u32 %v210, 4294901760
    %v918 = vsub.f32 %v210, %v917
    %v919 = vand.u32 %v918, 4294901760
    %920 = vmatpush1.msra.mxu0 %v919
    %921 = vmatprep.subr.mxu0 0.0
    %v922 = vand.u32 %v211, 4294901760
    %v923 = vsub.f32 %v211, %v922
    %v924 = vand.u32 %v923, 4294901760
    %925 = vmatpush1.msra.mxu0 %v924
    %926 = vmatprep.subr.mxu0 0.0
    %v927 = vand.u32 %v212, 4294901760
    %v928 = vsub.f32 %v212, %v927
    %v929 = vand.u32 %v928, 4294901760
    %930 = vmatpush1.msra.mxu0 %v929
    %931 = vmatprep.subr.mxu0 0.0
    %v932 = vand.u32 %v213, 4294901760
    %v933 = vsub.f32 %v213, %v932
    %v934 = vand.u32 %v933, 4294901760
    %935 = vmatpush1.msra.mxu0 %v934
    %936 = vmatprep.subr.mxu0 0.0
    %v937 = vand.u32 %v214, 4294901760
    %v938 = vsub.f32 %v214, %v937
    %v939 = vand.u32 %v938, 4294901760
    %940 = vmatpush1.msra.mxu0 %v939
    %941 = vmatprep.subr.mxu0 0.0
    %v942 = vand.u32 %v215, 4294901760
    %v943 = vsub.f32 %v215, %v942
    %v944 = vand.u32 %v943, 4294901760
    %945 = vmatpush1.msra.mxu0 %v944
    %946 = vmatprep.subr.mxu0 0.0
    %v947 = vand.u32 %v216, 4294901760
    %v948 = vsub.f32 %v216, %v947
    %v949 = vand.u32 %v948, 4294901760
    %950 = vmatpush1.msra.mxu0 %v949
    %951 = vmatprep.subr.mxu0 0.0
    %v952 = vand.u32 %v217, 4294901760
    %v953 = vsub.f32 %v217, %v952
    %v954 = vand.u32 %v953, 4294901760
    %955 = vmatpush1.msra.mxu0 %v954
    %956 = vmatprep.subr.mxu0 0.0
    %v957 = vand.u32 %v218, 4294901760
    %v958 = vsub.f32 %v218, %v957
    %v959 = vand.u32 %v958, 4294901760
    %960 = vmatpush1.msra.mxu0 %v959
    %961 = vmatprep.subr.mxu0 0.0
    %v962 = vand.u32 %v219, 4294901760
    %v963 = vsub.f32 %v219, %v962
    %v964 = vand.u32 %v963, 4294901760
    %965 = vmatpush1.msra.mxu0 %v964
    %966 = vmatprep.subr.mxu0 0.0
    %v967 = vand.u32 %v220, 4294901760
    %v968 = vsub.f32 %v220, %v967
    %v969 = vand.u32 %v968, 4294901760
    %970 = vmatpush1.msra.mxu0 %v969
    %v971 = vand.u32 %v22, 4294901760
    %972 = vmatprep.mubr.f32.mxu0 %v971
    %v973 = vand.u32 %v21, 4294901760
    %974 = vmatmul.mubr.f32.gmra.mrb[0].mxu0 %v973
    %v975 = vpop.f32.mrb[0].mxu0
    %v976 = vadd.f32 %v808, %v975
    %v977 = vpop.f32.mrb[0].mxu0
    %978 = vdwg.mxu0
    %979 = vmatprep.subr.mxu0 0.0
    %v980 = vand.u32 %v189, 4294901760
    %981 = vmatpush1.msra.mxu0 %v980
    %982 = vmatprep.subr.mxu0 0.0
    %v983 = vand.u32 %v190, 4294901760
    %984 = vmatpush1.msra.mxu0 %v983
    %985 = vmatprep.subr.mxu0 0.0
    %v986 = vand.u32 %v191, 4294901760
    %987 = vmatpush1.msra.mxu0 %v986
    %988 = vmatprep.subr.mxu0 0.0
    %v989 = vand.u32 %v192, 4294901760
    %990 = vmatpush1.msra.mxu0 %v989
    %991 = vmatprep.subr.mxu0 0.0
    %v992 = vand.u32 %v193, 4294901760
    %993 = vmatpush1.msra.mxu0 %v992
    %994 = vmatprep.subr.mxu0 0.0
    %v995 = vand.u32 %v194, 4294901760
    %996 = vmatpush1.msra.mxu0 %v995
    %997 = vmatprep.subr.mxu0 0.0
    %v998 = vand.u32 %v195, 4294901760
    %999 = vmatpush1.msra.mxu0 %v998
    %1000 = vmatprep.subr.mxu0 0.0
    %v1001 = vand.u32 %v196, 4294901760
    %1002 = vmatpush1.msra.mxu0 %v1001
    %1003 = vmatprep.subr.mxu0 0.0
    %v1004 = vand.u32 %v197, 4294901760
    %1005 = vmatpush1.msra.mxu0 %v1004
    %1006 = vmatprep.subr.mxu0 0.0
    %v1007 = vand.u32 %v198, 4294901760
    %1008 = vmatpush1.msra.mxu0 %v1007
    %1009 = vmatprep.subr.mxu0 0.0
    %v1010 = vand.u32 %v199, 4294901760
    %1011 = vmatpush1.msra.mxu0 %v1010
    %1012 = vmatprep.subr.mxu0 0.0
    %v1013 = vand.u32 %v200, 4294901760
    %1014 = vmatpush1.msra.mxu0 %v1013
    %1015 = vmatprep.subr.mxu0 0.0
    %v1016 = vand.u32 %v201, 4294901760
    %1017 = vmatpush1.msra.mxu0 %v1016
    %1018 = vmatprep.subr.mxu0 0.0
    %v1019 = vand.u32 %v202, 4294901760
    %1020 = vmatpush1.msra.mxu0 %v1019
    %1021 = vmatprep.subr.mxu0 0.0
    %v1022 = vand.u32 %v203, 4294901760
    %1023 = vmatpush1.msra.mxu0 %v1022
    %1024 = vmatprep.subr.mxu0 0.0
    %v1025 = vand.u32 %v204, 4294901760
    %1026 = vmatpush1.msra.mxu0 %v1025
    %1027 = vmatprep.subr.mxu0 0.0
    %v1028 = vand.u32 %v205, 4294901760
    %1029 = vmatpush1.msra.mxu0 %v1028
    %1030 = vmatprep.subr.mxu0 0.0
    %v1031 = vand.u32 %v206, 4294901760
    %1032 = vmatpush1.msra.mxu0 %v1031
    %1033 = vmatprep.subr.mxu0 0.0
    %v1034 = vand.u32 %v207, 4294901760
    %1035 = vmatpush1.msra.mxu0 %v1034
    %1036 = vmatprep.subr.mxu0 0.0
    %v1037 = vand.u32 %v208, 4294901760
    %1038 = vmatpush1.msra.mxu0 %v1037
    %1039 = vmatprep.subr.mxu0 0.0
    %v1040 = vand.u32 %v209, 4294901760
    %1041 = vmatpush1.msra.mxu0 %v1040
    %1042 = vmatprep.subr.mxu0 0.0
    %v1043 = vand.u32 %v210, 4294901760
    %1044 = vmatpush1.msra.mxu0 %v1043
    %1045 = vmatprep.subr.mxu0 0.0
    %v1046 = vand.u32 %v211, 4294901760
    %1047 = vmatpush1.msra.mxu0 %v1046
    %1048 = vmatprep.subr.mxu0 0.0
    %v1049 = vand.u32 %v212, 4294901760
    %1050 = vmatpush1.msra.mxu0 %v1049
    %1051 = vmatprep.subr.mxu0 0.0
    %v1052 = vand.u32 %v213, 4294901760
    %1053 = vmatpush1.msra.mxu0 %v1052
    %1054 = vmatprep.subr.mxu0 0.0
    %v1055 = vand.u32 %v214, 4294901760
    %1056 = vmatpush1.msra.mxu0 %v1055
    %1057 = vmatprep.subr.mxu0 0.0
    %v1058 = vand.u32 %v215, 4294901760
    %1059 = vmatpush1.msra.mxu0 %v1058
    %1060 = vmatprep.subr.mxu0 0.0
    %v1061 = vand.u32 %v216, 4294901760
    %1062 = vmatpush1.msra.mxu0 %v1061
    %1063 = vmatprep.subr.mxu0 0.0
    %v1064 = vand.u32 %v217, 4294901760
    %1065 = vmatpush1.msra.mxu0 %v1064
    %1066 = vmatprep.subr.mxu0 0.0
    %v1067 = vand.u32 %v218, 4294901760
    %1068 = vmatpush1.msra.mxu0 %v1067
    %1069 = vmatprep.subr.mxu0 0.0
    %v1070 = vand.u32 %v219, 4294901760
    %1071 = vmatpush1.msra.mxu0 %v1070
    %1072 = vmatprep.subr.mxu0 0.0
    %v1073 = vand.u32 %v220, 4294901760
    %1074 = vmatpush1.msra.mxu0 %v1073
    %v1075 = vand.u32 %v22, 4294901760
    %1076 = vmatprep.mubr.f32.mxu0 %v1075
    %v1077 = vand.u32 %v21, 4294901760
    %1078 = vmatmul.mubr.f32.gmra.mrb[0].mxu0 %v1077
    %v1079 = vpop.f32.mrb[0].mxu0
    %v1080 = vadd.f32 %v976, %v1079
    %v1081 = vpop.f32.mrb[0].mxu0
    %1082 = vdwg.mxu0
    %v1083 = vmul.f32 %v1080, 0.0625
    %v1085 = vcombine.high %v1083, %v1083
    %v1087 = vunpack.c.l.s4 1966171168
    %v1088 = vunpack.c.0.s8 %v1087
    %v1089 = vlaneseq
    %v1090 = vshrl.u32 %v1089, 7
    %v1091 = vsub.s32 %v1088, %v1090
    %v1092 = vrot.slane %v1083, %v1091
    %v1094 = vunpack.c.l.s4 1966171168
    %v1095 = vunpack.c.0.s8 %v1094
    %v1096 = vlaneseq
    %v1097 = vshrl.u32 %v1096, 7
    %v1098 = vsub.s32 %v1095, %v1097
    %v1099 = vrot.slane %v1085, %v1098
    %v1100 = vcombine.high %v1092, %v1092
    %v1101 = vcombine.high %v1099, %v1099
    %v1103 = vunpack.c.l.s4 1966171168
    %v1104 = vunpack.c.0.s8 %v1103
    %v1105 = vlaneseq
    %v1106 = vshrl.u32 %v1105, 7
    %v1107 = vsub.s32 %v1104, %v1106
    %v1108 = vrot.slane %v1092, %v1107
    %v1110 = vunpack.c.l.s4 1966171168
    %v1111 = vunpack.c.0.s8 %v1110
    %v1112 = vlaneseq
    %v1113 = vshrl.u32 %v1112, 7
    %v1114 = vsub.s32 %v1111, %v1113
    %v1115 = vrot.slane %v1099, %v1114
    %v1117 = vunpack.c.l.s4 1966171168
    %v1118 = vunpack.c.0.s8 %v1117
    %v1119 = vlaneseq
    %v1120 = vshrl.u32 %v1119, 7
    %v1121 = vsub.s32 %v1118, %v1120
    %v1122 = vrot.slane %v1100, %v1121
    %v1124 = vunpack.c.l.s4 1966171168
    %v1125 = vunpack.c.0.s8 %v1124
    %v1126 = vlaneseq
    %v1127 = vshrl.u32 %v1126, 7
    %v1128 = vsub.s32 %v1125, %v1127
    %v1129 = vrot.slane %v1101, %v1128
    %v1130 = vcombine.high %v1108, %v1108
    %v1131 = vcombine.high %v1115, %v1115
    %v1132 = vcombine.high %v1122, %v1122
    %v1133 = vcombine.high %v1129, %v1129
    %vm1142 = vcmask 122880
    %1143 = vst.msk [vmem:[#allocation5] sm:$0x1] %vm1142, %v1108
    %1144 = vst.msk [vmem:[#allocation5 + $0x1] sm:$0x1] %vm1142, %v1122
    %1145 = vst.msk [vmem:[#allocation5 + $0x2] sm:$0x1] %vm1142, %v1130
    %1146 = vst.msk [vmem:[#allocation5 + $0x3] sm:$0x1] %vm1142, %v1132
    %1147 = vst.msk [vmem:[#allocation5 + $0x4] sm:$0x1] %vm1142, %v1115
    %1148 = vst.msk [vmem:[#allocation5 + $0x5] sm:$0x1] %vm1142, %v1129
    %1149 = vst.msk [vmem:[#allocation5 + $0x6] sm:$0x1] %vm1142, %v1131
    %1150 = vst.msk [vmem:[#allocation5 + $0x7] sm:$0x1] %vm1142, %v1133
    // Predicated region
    $region10: #{tpu_custom_call.1} parent=1 // pred_check
      _
    $region11: #{tpu_custom_call.1} parent=1 // pred_check_branch
      %1152 = sbr.rel (0) target = $region13
    $region12: #{tpu_custom_call.1} parent=1 // pred_region
      %s1154 = ssub.s32 128, 128
      %1155 = vsyncadd [#allocation4], %s1154
      %s1156 = sshll.u32 [#allocation5], 4
      %s1157 = int_to_ptr.vmem [resolvable:$true] %s1156
      %1162 = dma.vmem_to_hbm [thread:$0]  %s1157, 128, %s1, [#allocation4], 16, 16, 1
    $region13: #{tpu_custom_call.1} parent=1 // pred_fallthru
      _
    // Predicated region
    $region14: #{tpu_custom_call.1} parent=1 // pred_check
      _
    $region15: #{tpu_custom_call.1} parent=1 // pred_check_branch
      %1164 = sbr.rel (0) target = $region17
    $region16: #{tpu_custom_call.1} parent=1 // pred_region
      %1165 = dma.done [#allocation4], 128
    $region17: #{tpu_custom_call.1} parent=1 // pred_fallthru
      _
    %1166 = vsyncpa [#allocation3], 1
    %1167 = vsyncpa [#allocation4], 1

</llo_original>
